<compile_context>
chip_gen: v7x
topology: tpu7x:2x2x1
jax: 0.10.0
libtpu: 0.0.40
codegen_flags: <defaults>
</compile_context>

<pallas_src>
import functools

import numpy as np
import jax
import jax.numpy as jnp
from jax import lax
from jax.experimental import pallas as pl
from jax.experimental.pallas import tpu as pltpu

_SENTINEL = 0x7FFFFFFF   # largest positive int32 bit pattern: invalid/padding lanes
_SEARCH_STEPS = 32       # enough for the 2^31 non-negative-float bit range
_UNROLL = 4              # manual unroll factor of the search loop


def _loe_loss_kernel(meta_ref, bits_ref, o_ref, *, alpha):
    # meta_ref: SMEM (3,) f32 = [N, k_normal, k_anomaly]   (already floored)
    # bits_ref: VMEM (rows, 128) int32 bit patterns of u = x^2; invalid = sentinel
    bits = bits_ref[...]

    one = jnp.float32(1.0)
    zero = jnp.float32(0.0)
    sentinel = jnp.int32(_SENTINEL)
    ones11 = jnp.ones((1, 1), jnp.float32)

    n_f = ones11 * meta_ref[0]        # (1,1) f32
    k_norm_f = ones11 * meta_ref[1]   # (1,1) f32
    k_anom_f = ones11 * meta_ref[2]   # (1,1) f32

    # NOTE: counts are accumulated in f32 -> exact up to 2^24 valid elements.
    def count_le(mid):
        return jnp.sum(jnp.where(bits <= mid, one, zero), keepdims=True)  # (1,1)

    need_norm = (float(alpha) != 1.0)   # static (alpha is a Python float)
    need_anom = (float(alpha) != 0.0)

    # 1-indexed ranks (from smallest) of the thresholds we need.
    targets = []
    if need_norm:
        targets.append(k_norm_f)                                   # k-th smallest
    if need_anom:
        # threshold of the top-k_anom == (N - k_anom + 1)-th smallest; clamp keeps
        # the search well-defined when k_anom == 0 (result unused then).
        targets.append(jnp.minimum(n_f - k_anom_f + one, n_f))

    # Fused multi-target binary search on the int32 bit patterns.
    # Invariant: every mid < 0x7FFFFFFF, so sentinel lanes are never counted and
    # no explicit validity mask is needed in the hot loop.
    lo0 = jnp.zeros((1, 1), jnp.int32)
    hi0 = jnp.full((1, 1), _SENTINEL, dtype=jnp.int32)
    init = tuple((lo0, hi0) for _ in targets)

    def body(_, carry):
        for _u in range(_UNROLL):
            nxt = []
            for (lo, hi), k_f in zip(carry, targets):
                mid = lo + ((hi - lo) >> 1)          # (1,1) i32, mid < hi <= sentinel
                go_low = count_le(mid) >= k_f        # (1,1) bool (f32 count, exact)
                nxt.append((jnp.where(go_low, lo, mid + 1),
                            jnp.where(go_low, mid, hi)))
            carry = tuple(nxt)
        return carry

    final = lax.fori_loop(0, _SEARCH_STEPS // _UNROLL, body, init)
    thresholds = [lo for (lo, _hi) in final]

    # u is only needed in the epilogue; recover it from the resident bits.
    u = pltpu.bitcast(bits, jnp.float32)             # (rows,128); sentinel -> NaN (discarded)

    normal_total = jnp.zeros((1, 1), jnp.float32)
    anom_total = jnp.zeros((1, 1), jnp.float32)
    denom = jnp.zeros((1, 1), jnp.float32)
    idx = 0

    if need_norm:
        t_lo_bits = thresholds[idx]; idx += 1
        # The search converges exactly onto a bit pattern that is present, so the
        # threshold value is just its bitcast (no max-reduction needed).
        t_lo_val = pltpu.bitcast(t_lo_bits, jnp.float32)           # (1,1)
        lt_lo = bits < t_lo_bits                                   # sentinel auto-excluded
        cnt_lt = jnp.sum(jnp.where(lt_lo, one, zero), keepdims=True)
        sum_lt = jnp.sum(jnp.where(lt_lo, u, zero), keepdims=True)
        normal_total = sum_lt + (k_norm_f - cnt_lt) * t_lo_val     # fill ties at threshold
        normal_total = jnp.where(k_norm_f > zero, normal_total, zero)
        denom = denom + k_norm_f

    if need_anom:
        t_hi_bits = thresholds[idx]
        t_hi_val = pltpu.bitcast(t_hi_bits, jnp.float32)           # (1,1)
        gt_hi = (bits > t_hi_bits) & (bits < sentinel)             # must exclude sentinel here
        cnt_gt = jnp.sum(jnp.where(gt_hi, one, zero), keepdims=True)
        y_anom = 1.0 / (u + 1e-6)                                  # epilogue-only
        sum_gt = jnp.sum(jnp.where(gt_hi, y_anom, zero), keepdims=True)
        anom_total = sum_gt + (k_anom_f - cnt_gt) * (1.0 / (t_hi_val + 1e-6))
        anom_total = jnp.where(k_anom_f > zero, anom_total, zero)
        denom = denom + k_anom_f

    # k_norm + k_anom == 0 gives 0/0 = NaN, matching torch.mean of an empty tensor.
    o_ref[...] = (normal_total + anom_total) / denom


def _pad_to_tiles(n):
    tile = 8 * 128
    return max(tile, ((n + tile - 1) // tile) * tile)


@functools.partial(jax.jit, static_argnames=("alpha",))
def loe_loss(output, target, alpha):
    """Pallas implementation of LOELoss.forward(output, target). Fully on-device."""
    alpha = float(alpha)
    x = jnp.asarray(output, jnp.float32).reshape(-1)
    valid = jnp.asarray(target).reshape(-1) == 0
    n = x.shape[0]
    npad = _pad_to_tiles(n)
    rows = npad // 128

    # Fold the target==0 mask into the data: pre-masked bit patterns of u = x^2.
    u = x * x
    bits = lax.bitcast_convert_type(u, jnp.int32)
    bits = jnp.where(valid, bits, jnp.int32(_SENTINEL))
    bits = jnp.pad(bits, (0, npad - n), constant_values=_SENTINEL)
    bits2d = bits.reshape(rows, 128)                 # sublane-dense (rows, 128)

    # N / k_normal / k_anomaly on device (SMEM scalars).
    # TODO(synk): floors are in float32 here vs Python float64 int() in the torch
    # module; can only differ if N*alpha lies within an f32 ulp of an integer.
    n_f = jnp.sum(valid.astype(jnp.float32))
    k_anom_f = jnp.floor(n_f * jnp.float32(alpha))
    k_norm_f = jnp.floor(n_f * jnp.float32(1.0 - alpha))
    meta = jnp.stack([n_f, k_norm_f, k_anom_f]).astype(jnp.float32)   # (3,)

    # Live set is essentially the bits buffer (4 B/elt) plus transients.
    vmem_limit = int(min(100 * 1024 * 1024,
                         max(16 * 1024 * 1024, 2 * npad * 4 + (4 << 20))))

    kernel = functools.partial(_loe_loss_kernel, alpha=alpha)
    res = pl.pallas_call(
        kernel,
        out_shape=jax.ShapeDtypeStruct((1, 1), jnp.float32),
        in_specs=[pl.BlockSpec(memory_space=pltpu.MemorySpace.SMEM),
                  pl.BlockSpec(memory_space=pltpu.MemorySpace.VMEM)],
        out_specs=pl.BlockSpec(memory_space=pltpu.MemorySpace.VMEM),
        compiler_params=pltpu.CompilerParams(vmem_limit_bytes=vmem_limit),
    )(meta, bits2d)
    return res[0, 0]


def loe_loss_ref(output, target, alpha):
    """Pure numpy reference mirroring the PyTorch forward."""
    x = np.asarray(output, np.float32).reshape(-1)
    t = np.asarray(target).reshape(-1)
    x = x[t == 0]
    y_normal = x ** 2
    y_anom = 1.0 / (x ** 2 + 1e-6)
    score = y_normal - y_anom
    n = score.shape[0]
    kn = int(n * (1.0 - alpha))
    ka = int(n * alpha)
    order = np.argsort(score, kind="stable")
    normal_idx = order[:kn]
    anom_idx = order[n - ka:] if ka > 0 else np.array([], dtype=np.int64)
    loss = np.concatenate([y_normal[normal_idx], y_anom[anom_idx]])
    return np.float32(loss.mean())


if __name__ == "__main__":
    key = jax.random.PRNGKey(0)
    k1, k2 = jax.random.split(key)

    # Test 1: random scores, ~25% labeled anomalies masked out.
    B = 256
    output = jax.random.normal(k1, (B,), dtype=jnp.float32)
    target = (jax.random.uniform(k2, (B,)) < 0.25).astype(jnp.int32)  # 0 = unlabeled
    alpha = 0.2
    loss = loe_loss(output, target, alpha)
    jax.block_until_ready(loss)
    ref = loe_loss_ref(np.asarray(output), np.asarray(target), alpha)
    assert np.allclose(float(loss), float(ref), rtol=1e-3, atol=1e-4), (float(loss), float(ref))

    # Test 2: duplicated values -> ties at the top-k boundaries, non-aligned N.
    out2 = jnp.concatenate([jnp.zeros((8,), jnp.float32),
                            2.0 * jnp.ones((8,), jnp.float32),
                            jax.random.normal(k1, (48,), dtype=jnp.float32)])
    tgt2 = jnp.zeros((64,), jnp.int32).at[::5].set(1)
    loss2 = loe_loss(out2, tgt2, 0.3)
    jax.block_until_ready(loss2)
    ref2 = loe_loss_ref(np.asarray(out2), np.asarray(tgt2), 0.3)
    assert np.allclose(float(loss2), float(ref2), rtol=1e-3, atol=1e-4), (float(loss2), float(ref2))

    # Test 3/4: degenerate alphas exercise the statically-specialized single-search paths.
    loss3 = loe_loss(output, target, 0.0)
    jax.block_until_ready(loss3)
    ref3 = loe_loss_ref(np.asarray(output), np.asarray(target), 0.0)
    assert np.allclose(float(loss3), float(ref3), rtol=1e-3, atol=1e-4), (float(loss3), float(ref3))

    loss4 = loe_loss(output, target, 1.0)
    jax.block_until_ready(loss4)
    ref4 = loe_loss_ref(np.asarray(output), np.asarray(target), 1.0)
    assert np.allclose(float(loss4), float(ref4), rtol=1e-3, atol=1e-4), (float(loss4), float(ref4))

    print("KERNEL_OK")
</pallas_src>

<mosaic_0001>
module attributes {stable_mosaic.version = 11 : i64} {
  func.func @_loe_loss_kernel(%arg0: memref<3xf32, #tpu.memory_space<smem>>, %arg1: memref<8x128xi32, #tpu.memory_space<vmem>>, %arg2: memref<1x1xf32, #tpu.memory_space<vmem>>) attributes {dimension_semantics = [], scalar_prefetch = 0 : i64, scratch_operands = 0 : i64, tpu.core_type = #tpu.core_type<tc>} {
    %c0 = arith.constant 0 : index
    %c0_0 = arith.constant 0 : index
    %0 = vector.load %arg1[%c0, %c0_0] : memref<8x128xi32, #tpu.memory_space<vmem>>, vector<8x128xi32>
    %cst = arith.constant 1.000000e+00 : f32
    %1 = vector.broadcast %cst : f32 to vector<1x1xf32>
    %c0_1 = arith.constant 0 : index
    %2 = memref.load %arg0[%c0_1] : memref<3xf32, #tpu.memory_space<smem>>
    %3 = vector.broadcast %2 : f32 to vector<1x1xf32>
    %4 = arith.mulf %1, %3 : vector<1x1xf32>
    %c1 = arith.constant 1 : index
    %5 = memref.load %arg0[%c1] : memref<3xf32, #tpu.memory_space<smem>>
    %6 = vector.broadcast %5 : f32 to vector<1x1xf32>
    %7 = arith.mulf %1, %6 : vector<1x1xf32>
    %c2 = arith.constant 2 : index
    %8 = memref.load %arg0[%c2] : memref<3xf32, #tpu.memory_space<smem>>
    %9 = vector.broadcast %8 : f32 to vector<1x1xf32>
    %10 = arith.mulf %1, %9 : vector<1x1xf32>
    %11 = arith.subf %4, %10 : vector<1x1xf32>
    %cst_2 = arith.constant 1.000000e+00 : f32
    %12 = vector.broadcast %cst_2 : f32 to vector<1x1xf32>
    %13 = arith.addf %11, %12 : vector<1x1xf32>
    %14 = arith.minimumf %13, %4 : vector<1x1xf32>
    %c0_i32 = arith.constant 0 : i32
    %15 = vector.broadcast %c0_i32 : i32 to vector<1x1xi32>
    %c2147483647_i32 = arith.constant 2147483647 : i32
    %16 = vector.broadcast %c2147483647_i32 : i32 to vector<1x1xi32>
    %cst_3 = arith.constant 1.000000e+00 : f32
    %cst_4 = arith.constant 0.000000e+00 : f32
    %c0_i32_5 = arith.constant 0 : i32
    %c8_i32 = arith.constant 8 : i32
    %17 = arith.addi %c0_i32_5, %c8_i32 : i32
    %c1_i32 = arith.constant 1 : i32
    %18:4 = scf.for %arg3 = %c0_i32_5 to %17 step %c1_i32 iter_args(%arg4 = %15, %arg5 = %16, %arg6 = %15, %arg7 = %16) -> (vector<1x1xi32>, vector<1x1xi32>, vector<1x1xi32>, vector<1x1xi32>)  : i32 {
      %87 = arith.subi %arg5, %arg4 : vector<1x1xi32>
      %c1_i32_28 = arith.constant 1 : i32
      %88 = vector.broadcast %c1_i32_28 : i32 to vector<1x1xi32>
      %89 = arith.shrsi %87, %88 : vector<1x1xi32>
      %90 = arith.addi %arg4, %89 : vector<1x1xi32>
      %91 = vector.broadcast %90 : vector<1x1xi32> to vector<8x128xi32>
      %92 = arith.cmpi sle, %0, %91 : vector<8x128xi32>
      %93 = vector.broadcast %cst_3 : f32 to vector<8x128xf32>
      %94 = vector.broadcast %cst_4 : f32 to vector<8x128xf32>
      %95 = arith.select %92, %93, %94 : vector<8x128xi1>, vector<8x128xf32>
      %96 = vector.shape_cast %95 : vector<8x128xf32> to vector<1x8x128xf32>
      %cst_29 = arith.constant dense<0.000000e+00> : vector<1xf32>
      %97 = vector.multi_reduction <add>, %96, %cst_29 [1, 2] : vector<1x8x128xf32> to vector<1xf32>
      %98 = vector.shape_cast %97 : vector<1xf32> to vector<1x1x1xf32>
      %99 = vector.extract %98[0, 0, 0] : f32 from vector<1x1x1xf32>
      %100 = vector.broadcast %99 : f32 to vector<1x1xf32>
      %101 = arith.cmpf oge, %100, %7 : vector<1x1xf32>
      %c1_i32_30 = arith.constant 1 : i32
      %102 = vector.broadcast %c1_i32_30 : i32 to vector<1x1xi32>
      %103 = arith.addi %90, %102 : vector<1x1xi32>
      %104 = arith.select %101, %arg4, %103 : vector<1x1xi1>, vector<1x1xi32>
      %105 = arith.select %101, %90, %arg5 : vector<1x1xi1>, vector<1x1xi32>
      %106 = arith.subi %arg7, %arg6 : vector<1x1xi32>
      %c1_i32_31 = arith.constant 1 : i32
      %107 = vector.broadcast %c1_i32_31 : i32 to vector<1x1xi32>
      %108 = arith.shrsi %106, %107 : vector<1x1xi32>
      %109 = arith.addi %arg6, %108 : vector<1x1xi32>
      %110 = vector.broadcast %109 : vector<1x1xi32> to vector<8x128xi32>
      %111 = arith.cmpi sle, %0, %110 : vector<8x128xi32>
      %112 = vector.broadcast %cst_3 : f32 to vector<8x128xf32>
      %113 = vector.broadcast %cst_4 : f32 to vector<8x128xf32>
      %114 = arith.select %111, %112, %113 : vector<8x128xi1>, vector<8x128xf32>
      %115 = vector.shape_cast %114 : vector<8x128xf32> to vector<1x8x128xf32>
      %cst_32 = arith.constant dense<0.000000e+00> : vector<1xf32>
      %116 = vector.multi_reduction <add>, %115, %cst_32 [1, 2] : vector<1x8x128xf32> to vector<1xf32>
      %117 = vector.shape_cast %116 : vector<1xf32> to vector<1x1x1xf32>
      %118 = vector.extract %117[0, 0, 0] : f32 from vector<1x1x1xf32>
      %119 = vector.broadcast %118 : f32 to vector<1x1xf32>
      %120 = arith.cmpf oge, %119, %14 : vector<1x1xf32>
      %c1_i32_33 = arith.constant 1 : i32
      %121 = vector.broadcast %c1_i32_33 : i32 to vector<1x1xi32>
      %122 = arith.addi %109, %121 : vector<1x1xi32>
      %123 = arith.select %120, %arg6, %122 : vector<1x1xi1>, vector<1x1xi32>
      %124 = arith.select %120, %109, %arg7 : vector<1x1xi1>, vector<1x1xi32>
      %125 = arith.subi %105, %104 : vector<1x1xi32>
      %c1_i32_34 = arith.constant 1 : i32
      %126 = vector.broadcast %c1_i32_34 : i32 to vector<1x1xi32>
      %127 = arith.shrsi %125, %126 : vector<1x1xi32>
      %128 = arith.addi %104, %127 : vector<1x1xi32>
      %129 = vector.broadcast %128 : vector<1x1xi32> to vector<8x128xi32>
      %130 = arith.cmpi sle, %0, %129 : vector<8x128xi32>
      %131 = vector.broadcast %cst_3 : f32 to vector<8x128xf32>
      %132 = vector.broadcast %cst_4 : f32 to vector<8x128xf32>
      %133 = arith.select %130, %131, %132 : vector<8x128xi1>, vector<8x128xf32>
      %134 = vector.shape_cast %133 : vector<8x128xf32> to vector<1x8x128xf32>
      %cst_35 = arith.constant dense<0.000000e+00> : vector<1xf32>
      %135 = vector.multi_reduction <add>, %134, %cst_35 [1, 2] : vector<1x8x128xf32> to vector<1xf32>
      %136 = vector.shape_cast %135 : vector<1xf32> to vector<1x1x1xf32>
      %137 = vector.extract %136[0, 0, 0] : f32 from vector<1x1x1xf32>
      %138 = vector.broadcast %137 : f32 to vector<1x1xf32>
      %139 = arith.cmpf oge, %138, %7 : vector<1x1xf32>
      %c1_i32_36 = arith.constant 1 : i32
      %140 = vector.broadcast %c1_i32_36 : i32 to vector<1x1xi32>
      %141 = arith.addi %128, %140 : vector<1x1xi32>
      %142 = arith.select %139, %104, %141 : vector<1x1xi1>, vector<1x1xi32>
      %143 = arith.select %139, %128, %105 : vector<1x1xi1>, vector<1x1xi32>
      %144 = arith.subi %124, %123 : vector<1x1xi32>
      %c1_i32_37 = arith.constant 1 : i32
      %145 = vector.broadcast %c1_i32_37 : i32 to vector<1x1xi32>
      %146 = arith.shrsi %144, %145 : vector<1x1xi32>
      %147 = arith.addi %123, %146 : vector<1x1xi32>
      %148 = vector.broadcast %147 : vector<1x1xi32> to vector<8x128xi32>
      %149 = arith.cmpi sle, %0, %148 : vector<8x128xi32>
      %150 = vector.broadcast %cst_3 : f32 to vector<8x128xf32>
      %151 = vector.broadcast %cst_4 : f32 to vector<8x128xf32>
      %152 = arith.select %149, %150, %151 : vector<8x128xi1>, vector<8x128xf32>
      %153 = vector.shape_cast %152 : vector<8x128xf32> to vector<1x8x128xf32>
      %cst_38 = arith.constant dense<0.000000e+00> : vector<1xf32>
      %154 = vector.multi_reduction <add>, %153, %cst_38 [1, 2] : vector<1x8x128xf32> to vector<1xf32>
      %155 = vector.shape_cast %154 : vector<1xf32> to vector<1x1x1xf32>
      %156 = vector.extract %155[0, 0, 0] : f32 from vector<1x1x1xf32>
      %157 = vector.broadcast %156 : f32 to vector<1x1xf32>
      %158 = arith.cmpf oge, %157, %14 : vector<1x1xf32>
      %c1_i32_39 = arith.constant 1 : i32
      %159 = vector.broadcast %c1_i32_39 : i32 to vector<1x1xi32>
      %160 = arith.addi %147, %159 : vector<1x1xi32>
      %161 = arith.select %158, %123, %160 : vector<1x1xi1>, vector<1x1xi32>
      %162 = arith.select %158, %147, %124 : vector<1x1xi1>, vector<1x1xi32>
      %163 = arith.subi %143, %142 : vector<1x1xi32>
      %c1_i32_40 = arith.constant 1 : i32
      %164 = vector.broadcast %c1_i32_40 : i32 to vector<1x1xi32>
      %165 = arith.shrsi %163, %164 : vector<1x1xi32>
      %166 = arith.addi %142, %165 : vector<1x1xi32>
      %167 = vector.broadcast %166 : vector<1x1xi32> to vector<8x128xi32>
      %168 = arith.cmpi sle, %0, %167 : vector<8x128xi32>
      %169 = vector.broadcast %cst_3 : f32 to vector<8x128xf32>
      %170 = vector.broadcast %cst_4 : f32 to vector<8x128xf32>
      %171 = arith.select %168, %169, %170 : vector<8x128xi1>, vector<8x128xf32>
      %172 = vector.shape_cast %171 : vector<8x128xf32> to vector<1x8x128xf32>
      %cst_41 = arith.constant dense<0.000000e+00> : vector<1xf32>
      %173 = vector.multi_reduction <add>, %172, %cst_41 [1, 2] : vector<1x8x128xf32> to vector<1xf32>
      %174 = vector.shape_cast %173 : vector<1xf32> to vector<1x1x1xf32>
      %175 = vector.extract %174[0, 0, 0] : f32 from vector<1x1x1xf32>
      %176 = vector.broadcast %175 : f32 to vector<1x1xf32>
      %177 = arith.cmpf oge, %176, %7 : vector<1x1xf32>
      %c1_i32_42 = arith.constant 1 : i32
      %178 = vector.broadcast %c1_i32_42 : i32 to vector<1x1xi32>
      %179 = arith.addi %166, %178 : vector<1x1xi32>
      %180 = arith.select %177, %142, %179 : vector<1x1xi1>, vector<1x1xi32>
      %181 = arith.select %177, %166, %143 : vector<1x1xi1>, vector<1x1xi32>
      %182 = arith.subi %162, %161 : vector<1x1xi32>
      %c1_i32_43 = arith.constant 1 : i32
      %183 = vector.broadcast %c1_i32_43 : i32 to vector<1x1xi32>
      %184 = arith.shrsi %182, %183 : vector<1x1xi32>
      %185 = arith.addi %161, %184 : vector<1x1xi32>
      %186 = vector.broadcast %185 : vector<1x1xi32> to vector<8x128xi32>
      %187 = arith.cmpi sle, %0, %186 : vector<8x128xi32>
      %188 = vector.broadcast %cst_3 : f32 to vector<8x128xf32>
      %189 = vector.broadcast %cst_4 : f32 to vector<8x128xf32>
      %190 = arith.select %187, %188, %189 : vector<8x128xi1>, vector<8x128xf32>
      %191 = vector.shape_cast %190 : vector<8x128xf32> to vector<1x8x128xf32>
      %cst_44 = arith.constant dense<0.000000e+00> : vector<1xf32>
      %192 = vector.multi_reduction <add>, %191, %cst_44 [1, 2] : vector<1x8x128xf32> to vector<1xf32>
      %193 = vector.shape_cast %192 : vector<1xf32> to vector<1x1x1xf32>
      %194 = vector.extract %193[0, 0, 0] : f32 from vector<1x1x1xf32>
      %195 = vector.broadcast %194 : f32 to vector<1x1xf32>
      %196 = arith.cmpf oge, %195, %14 : vector<1x1xf32>
      %c1_i32_45 = arith.constant 1 : i32
      %197 = vector.broadcast %c1_i32_45 : i32 to vector<1x1xi32>
      %198 = arith.addi %185, %197 : vector<1x1xi32>
      %199 = arith.select %196, %161, %198 : vector<1x1xi1>, vector<1x1xi32>
      %200 = arith.select %196, %185, %162 : vector<1x1xi1>, vector<1x1xi32>
      %201 = arith.subi %181, %180 : vector<1x1xi32>
      %c1_i32_46 = arith.constant 1 : i32
      %202 = vector.broadcast %c1_i32_46 : i32 to vector<1x1xi32>
      %203 = arith.shrsi %201, %202 : vector<1x1xi32>
      %204 = arith.addi %180, %203 : vector<1x1xi32>
      %205 = vector.broadcast %204 : vector<1x1xi32> to vector<8x128xi32>
      %206 = arith.cmpi sle, %0, %205 : vector<8x128xi32>
      %207 = vector.broadcast %cst_3 : f32 to vector<8x128xf32>
      %208 = vector.broadcast %cst_4 : f32 to vector<8x128xf32>
      %209 = arith.select %206, %207, %208 : vector<8x128xi1>, vector<8x128xf32>
      %210 = vector.shape_cast %209 : vector<8x128xf32> to vector<1x8x128xf32>
      %cst_47 = arith.constant dense<0.000000e+00> : vector<1xf32>
      %211 = vector.multi_reduction <add>, %210, %cst_47 [1, 2] : vector<1x8x128xf32> to vector<1xf32>
      %212 = vector.shape_cast %211 : vector<1xf32> to vector<1x1x1xf32>
      %213 = vector.extract %212[0, 0, 0] : f32 from vector<1x1x1xf32>
      %214 = vector.broadcast %213 : f32 to vector<1x1xf32>
      %215 = arith.cmpf oge, %214, %7 : vector<1x1xf32>
      %c1_i32_48 = arith.constant 1 : i32
      %216 = vector.broadcast %c1_i32_48 : i32 to vector<1x1xi32>
      %217 = arith.addi %204, %216 : vector<1x1xi32>
      %218 = arith.select %215, %180, %217 : vector<1x1xi1>, vector<1x1xi32>
      %219 = arith.select %215, %204, %181 : vector<1x1xi1>, vector<1x1xi32>
      %220 = arith.subi %200, %199 : vector<1x1xi32>
      %c1_i32_49 = arith.constant 1 : i32
      %221 = vector.broadcast %c1_i32_49 : i32 to vector<1x1xi32>
      %222 = arith.shrsi %220, %221 : vector<1x1xi32>
      %223 = arith.addi %199, %222 : vector<1x1xi32>
      %224 = vector.broadcast %223 : vector<1x1xi32> to vector<8x128xi32>
      %225 = arith.cmpi sle, %0, %224 : vector<8x128xi32>
      %226 = vector.broadcast %cst_3 : f32 to vector<8x128xf32>
      %227 = vector.broadcast %cst_4 : f32 to vector<8x128xf32>
      %228 = arith.select %225, %226, %227 : vector<8x128xi1>, vector<8x128xf32>
      %229 = vector.shape_cast %228 : vector<8x128xf32> to vector<1x8x128xf32>
      %cst_50 = arith.constant dense<0.000000e+00> : vector<1xf32>
      %230 = vector.multi_reduction <add>, %229, %cst_50 [1, 2] : vector<1x8x128xf32> to vector<1xf32>
      %231 = vector.shape_cast %230 : vector<1xf32> to vector<1x1x1xf32>
      %232 = vector.extract %231[0, 0, 0] : f32 from vector<1x1x1xf32>
      %233 = vector.broadcast %232 : f32 to vector<1x1xf32>
      %234 = arith.cmpf oge, %233, %14 : vector<1x1xf32>
      %c1_i32_51 = arith.constant 1 : i32
      %235 = vector.broadcast %c1_i32_51 : i32 to vector<1x1xi32>
      %236 = arith.addi %223, %235 : vector<1x1xi32>
      %237 = arith.select %234, %199, %236 : vector<1x1xi1>, vector<1x1xi32>
      %238 = arith.select %234, %223, %200 : vector<1x1xi1>, vector<1x1xi32>
      scf.yield %218, %219, %237, %238 : vector<1x1xi32>, vector<1x1xi32>, vector<1x1xi32>, vector<1x1xi32>
    }
    %19 = tpu.bitcast %0 : vector<8x128xi32> -> vector<8x128xf32>
    %cst_6 = arith.constant 0.000000e+00 : f32
    %20 = vector.broadcast %cst_6 : f32 to vector<1x1xf32>
    %21 = tpu.bitcast %18#0 : vector<1x1xi32> -> vector<1x1xf32>
    %22 = vector.broadcast %18#0 : vector<1x1xi32> to vector<8x128xi32>
    %23 = arith.cmpi slt, %0, %22 : vector<8x128xi32>
    %cst_7 = arith.constant 1.000000e+00 : f32
    %cst_8 = arith.constant 0.000000e+00 : f32
    %24 = vector.broadcast %cst_7 : f32 to vector<8x128xf32>
    %25 = vector.broadcast %cst_8 : f32 to vector<8x128xf32>
    %26 = arith.select %23, %24, %25 : vector<8x128xi1>, vector<8x128xf32>
    %27 = vector.shape_cast %26 : vector<8x128xf32> to vector<1x8x128xf32>
    %cst_9 = arith.constant dense<0.000000e+00> : vector<1xf32>
    %28 = vector.multi_reduction <add>, %27, %cst_9 [1, 2] : vector<1x8x128xf32> to vector<1xf32>
    %29 = vector.shape_cast %28 : vector<1xf32> to vector<1x1x1xf32>
    %30 = vector.extract %29[0, 0, 0] : f32 from vector<1x1x1xf32>
    %31 = vector.broadcast %30 : f32 to vector<1x1xf32>
    %cst_10 = arith.constant 0.000000e+00 : f32
    %32 = vector.broadcast %cst_10 : f32 to vector<8x128xf32>
    %33 = arith.select %23, %19, %32 : vector<8x128xi1>, vector<8x128xf32>
    %34 = vector.shape_cast %33 : vector<8x128xf32> to vector<1x8x128xf32>
    %cst_11 = arith.constant dense<0.000000e+00> : vector<1xf32>
    %35 = vector.multi_reduction <add>, %34, %cst_11 [1, 2] : vector<1x8x128xf32> to vector<1xf32>
    %36 = vector.shape_cast %35 : vector<1xf32> to vector<1x1x1xf32>
    %37 = vector.extract %36[0, 0, 0] : f32 from vector<1x1x1xf32>
    %38 = vector.broadcast %37 : f32 to vector<1x1xf32>
    %39 = arith.subf %7, %31 : vector<1x1xf32>
    %40 = arith.mulf %39, %21 : vector<1x1xf32>
    %41 = arith.addf %38, %40 : vector<1x1xf32>
    %cst_12 = arith.constant 0.000000e+00 : f32
    %42 = vector.broadcast %cst_12 : f32 to vector<1x1xf32>
    %43 = arith.cmpf ogt, %7, %42 : vector<1x1xf32>
    %cst_13 = arith.constant 0.000000e+00 : f32
    %44 = vector.broadcast %cst_13 : f32 to vector<1x1xf32>
    %45 = arith.select %43, %41, %44 : vector<1x1xi1>, vector<1x1xf32>
    %46 = arith.addf %20, %7 : vector<1x1xf32>
    %47 = tpu.bitcast %18#2 : vector<1x1xi32> -> vector<1x1xf32>
    %48 = vector.broadcast %18#2 : vector<1x1xi32> to vector<8x128xi32>
    %49 = arith.cmpi sgt, %0, %48 : vector<8x128xi32>
    %c2147483647_i32_14 = arith.constant 2147483647 : i32
    %50 = vector.broadcast %c2147483647_i32_14 : i32 to vector<8x128xi32>
    %51 = arith.cmpi slt, %0, %50 : vector<8x128xi32>
    %52 = arith.andi %49, %51 : vector<8x128xi1>
    %cst_15 = arith.constant 1.000000e+00 : f32
    %cst_16 = arith.constant 0.000000e+00 : f32
    %53 = vector.broadcast %cst_15 : f32 to vector<8x128xf32>
    %54 = vector.broadcast %cst_16 : f32 to vector<8x128xf32>
    %55 = arith.select %52, %53, %54 : vector<8x128xi1>, vector<8x128xf32>
    %56 = vector.shape_cast %55 : vector<8x128xf32> to vector<1x8x128xf32>
    %cst_17 = arith.constant dense<0.000000e+00> : vector<1xf32>
    %57 = vector.multi_reduction <add>, %56, %cst_17 [1, 2] : vector<1x8x128xf32> to vector<1xf32>
    %58 = vector.shape_cast %57 : vector<1xf32> to vector<1x1x1xf32>
    %59 = vector.extract %58[0, 0, 0] : f32 from vector<1x1x1xf32>
    %60 = vector.broadcast %59 : f32 to vector<1x1xf32>
    %cst_18 = arith.constant 9.99999997E-7 : f32
    %61 = vector.broadcast %cst_18 : f32 to vector<8x128xf32>
    %62 = arith.addf %19, %61 : vector<8x128xf32>
    %cst_19 = arith.constant 1.000000e+00 : f32
    %63 = vector.broadcast %cst_19 : f32 to vector<8x128xf32>
    %64 = arith.divf %63, %62 : vector<8x128xf32>
    %cst_20 = arith.constant 0.000000e+00 : f32
    %65 = vector.broadcast %cst_20 : f32 to vector<8x128xf32>
    %66 = arith.select %52, %64, %65 : vector<8x128xi1>, vector<8x128xf32>
    %67 = vector.shape_cast %66 : vector<8x128xf32> to vector<1x8x128xf32>
    %cst_21 = arith.constant dense<0.000000e+00> : vector<1xf32>
    %68 = vector.multi_reduction <add>, %67, %cst_21 [1, 2] : vector<1x8x128xf32> to vector<1xf32>
    %69 = vector.shape_cast %68 : vector<1xf32> to vector<1x1x1xf32>
    %70 = vector.extract %69[0, 0, 0] : f32 from vector<1x1x1xf32>
    %71 = vector.broadcast %70 : f32 to vector<1x1xf32>
    %72 = arith.subf %10, %60 : vector<1x1xf32>
    %cst_22 = arith.constant 9.99999997E-7 : f32
    %73 = vector.broadcast %cst_22 : f32 to vector<1x1xf32>
    %74 = arith.addf %47, %73 : vector<1x1xf32>
    %cst_23 = arith.constant 1.000000e+00 : f32
    %75 = vector.broadcast %cst_23 : f32 to vector<1x1xf32>
    %76 = arith.divf %75, %74 : vector<1x1xf32>
    %77 = arith.mulf %72, %76 : vector<1x1xf32>
    %78 = arith.addf %71, %77 : vector<1x1xf32>
    %cst_24 = arith.constant 0.000000e+00 : f32
    %79 = vector.broadcast %cst_24 : f32 to vector<1x1xf32>
    %80 = arith.cmpf ogt, %10, %79 : vector<1x1xf32>
    %cst_25 = arith.constant 0.000000e+00 : f32
    %81 = vector.broadcast %cst_25 : f32 to vector<1x1xf32>
    %82 = arith.select %80, %78, %81 : vector<1x1xi1>, vector<1x1xf32>
    %83 = arith.addf %46, %10 : vector<1x1xf32>
    %84 = arith.addf %45, %82 : vector<1x1xf32>
    %85 = arith.divf %84, %83 : vector<1x1xf32>
    %c0_26 = arith.constant 0 : index
    %c0_27 = arith.constant 0 : index
    %86 = vector.load %arg2[%c0_26, %c0_27] : memref<1x1xf32, #tpu.memory_space<vmem>>, vector<1x1xf32>
    tpu.vector_store %arg2[%c0_26, %c0_27], %85 {strides = array<i32>} : memref<1x1xf32, #tpu.memory_space<vmem>>, vector<1x1xf32>,
    return
  }
}

</mosaic_0001>

<llo_original>
// kernel: loe_loss.1
$region0: #{loe_loss.1}
  #allocation0 [shape = 'u32[]', space=smem, size = 0x4, offset = 0x4, fixed_abs, tag = 'smem constant byte address 0x4 - core index']
  #allocation1 [shape = 'u32[144,128]{1,0:T(1,128)}', space=vmem, size = 0x12000, scoped, tag = 'internal scratch']
  %s0 = inlined_call_operand.vmem [shape: f32[3], index: 0, kind: input, shape index: {}]
  %s1 = inlined_call_operand.vmem [shape: s32[8,128], index: 1, kind: input, shape index: {}]
  %s2 = inlined_call_operand.hbm [shape: f32[1,1], index: 2, kind: output, shape index: {}]
  %s3 = sld [smem:[#allocation0]]
  $region29: #{loe_loss.1} parent=0
    _
  %s5 = ssub.s32 1, %s3
  %s6 = scalar_select 0, %s5, %s3
  $region1: #{loe_loss.1} parent=0
    #allocation2 [shape = 'u8[512]{0}', space=smem, size = 0x200, scoped, tag = 'input window, operand 0, single buffered']
    #allocation3 [shape = 's32[1]{0}', space=sflag, size = 0x4, scoped, tag = 'scoped memory for loe_loss.1']
    #allocation4 [shape = 's32[1]{0}', space=sflag, size = 0x4, scoped, tag = 'scoped memory for loe_loss.1']
    #allocation5 [shape = 'u8[512]{0}', space=vmem, size = 0x400, scoped, tag = 'output window, operand 0, single buffered']
    %7 = vsyncpa [#allocation4], 0
    %8 = vsyncpa [#allocation3], 0
    // Predicated region
    $region2: #{loe_loss.1} parent=1 // pred_check
      _
    $region3: #{loe_loss.1} parent=1 // pred_check_branch
      %10 = sbr.rel (0) target = $region5
    $region4: #{loe_loss.1} parent=1 // pred_region
      %s12 = ssub.s32 16, 16
      %13 = vsyncadd [#allocation4], %s12
      %s15 = sshll.u32 %s0, 4
      %s16 = int_to_ptr.vmem [resolvable:$true] %s15
      %18 = dma.vmem_to_smem %s16, 16, [#allocation2], [#allocation4]
    $region5: #{loe_loss.1} parent=1 // pred_fallthru
      _
    // Predicated region
    $region6: #{loe_loss.1} parent=1 // pred_check
      _
    $region7: #{loe_loss.1} parent=1 // pred_check_branch
      %20 = sbr.rel (0) target = $region9
    $region8: #{loe_loss.1} parent=1 // pred_region
      _
    $region9: #{loe_loss.1} parent=1 // pred_fallthru
      _
    // Predicated region
    $region10: #{loe_loss.1} parent=1 // pred_check
      _
    $region11: #{loe_loss.1} parent=1 // pred_check_branch
      %22 = sbr.rel (0) target = $region13
    $region12: #{loe_loss.1} parent=1 // pred_region
      %23 = dma.done [#allocation4], 16
    $region13: #{loe_loss.1} parent=1 // pred_fallthru
      _
    %24 = sfence
    %v25 = vld [vmem:[%s1] sm:$0xff]
    %s26 = sld [smem:[#allocation2]]
    %v27 = vstv %s26
    %s28 = sld [smem:[#allocation2 + $0x1]]
    %v29 = vstv %s28
    %s30 = sld [smem:[#allocation2 + $0x2]]
    %v31 = vstv %s30
    %v32 = vsub.f32 %v27, %v31
    %v33 = vadd.f32 %v32, 1.0
    %v34 = vmin.f32 %v33, %v27
    loop: start=0, step=1, limit=8
    $region14: #{loe_loss.1} parent=1 // loop_pre_header
      _
    $region15: #{loe_loss.1} parent=1 // loop_header
      %s36 = sphi 0, %s40
      %p37 = scmp.ge.s32.totalorder %s36, 8
      %v41 = vphi 0, %v176
      %v42 = vphi 2147483647, %v177
      %v43 = vphi 0, %v195
      %v44 = vphi 2147483647, %v196
    $region16: #{loe_loss.1} parent=1 // loop_header_branch
      %39 = sbr.rel (%p37) target = $region20
    $region17: #{loe_loss.1} parent=1 // loop_body
      %v45 = vsub.s32 %v42, %v41
      %v46 = vshra.s32 %v45, 1
      %v47 = vadd.s32 %v41, %v46
      %vm48 = vcmp.le.s32.totalorder %v25, %v47
      %v49 = vsel %vm48, 1.0, 0.0
      %50 = vadd.xlane.f32.xlu0 %v49
      %v51 = vpop.xlane.xlu0 %50
      %v52 = vrot.slane %v51, 4
      %v53 = vadd.f32 %v51, %v52
      %v54 = vrot.slane %v53, 2
      %v55 = vadd.f32 %v53, %v54
      %v56 = vrot.slane %v55, 1
      %v57 = vadd.f32 %v55, %v56
      %s58 = vtos %v57
      %v59 = vstv %s58
      %vm60 = vcmp.ge.f32.partialorder %v59, %v29
      %v61 = vadd.s32 %v47, 1
      %v62 = vsel %vm60, %v41, %v61
      %v63 = vsel %vm60, %v47, %v42
      %v64 = vsub.s32 %v44, %v43
      %v65 = vshra.s32 %v64, 1
      %v66 = vadd.s32 %v43, %v65
      %vm67 = vcmp.le.s32.totalorder %v25, %v66
      %v68 = vsel %vm67, 1.0, 0.0
      %69 = vadd.xlane.f32.xlu0 %v68
      %v70 = vpop.xlane.xlu0 %69
      %v71 = vrot.slane %v70, 4
      %v72 = vadd.f32 %v70, %v71
      %v73 = vrot.slane %v72, 2
      %v74 = vadd.f32 %v72, %v73
      %v75 = vrot.slane %v74, 1
      %v76 = vadd.f32 %v74, %v75
      %s77 = vtos %v76
      %v78 = vstv %s77
      %vm79 = vcmp.ge.f32.partialorder %v78, %v34
      %v80 = vadd.s32 %v66, 1
      %v81 = vsel %vm79, %v43, %v80
      %v82 = vsel %vm79, %v66, %v44
      %v83 = vsub.s32 %v63, %v62
      %v84 = vshra.s32 %v83, 1
      %v85 = vadd.s32 %v62, %v84
      %vm86 = vcmp.le.s32.totalorder %v25, %v85
      %v87 = vsel %vm86, 1.0, 0.0
      %88 = vadd.xlane.f32.xlu0 %v87
      %v89 = vpop.xlane.xlu0 %88
      %v90 = vrot.slane %v89, 4
      %v91 = vadd.f32 %v89, %v90
      %v92 = vrot.slane %v91, 2
      %v93 = vadd.f32 %v91, %v92
      %v94 = vrot.slane %v93, 1
      %v95 = vadd.f32 %v93, %v94
      %s96 = vtos %v95
      %v97 = vstv %s96
      %vm98 = vcmp.ge.f32.partialorder %v97, %v29
      %v99 = vadd.s32 %v85, 1
      %v100 = vsel %vm98, %v62, %v99
      %v101 = vsel %vm98, %v85, %v63
      %v102 = vsub.s32 %v82, %v81
      %v103 = vshra.s32 %v102, 1
      %v104 = vadd.s32 %v81, %v103
      %vm105 = vcmp.le.s32.totalorder %v25, %v104
      %v106 = vsel %vm105, 1.0, 0.0
      %107 = vadd.xlane.f32.xlu0 %v106
      %v108 = vpop.xlane.xlu0 %107
      %v109 = vrot.slane %v108, 4
      %v110 = vadd.f32 %v108, %v109
      %v111 = vrot.slane %v110, 2
      %v112 = vadd.f32 %v110, %v111
      %v113 = vrot.slane %v112, 1
      %v114 = vadd.f32 %v112, %v113
      %s115 = vtos %v114
      %v116 = vstv %s115
      %vm117 = vcmp.ge.f32.partialorder %v116, %v34
      %v118 = vadd.s32 %v104, 1
      %v119 = vsel %vm117, %v81, %v118
      %v120 = vsel %vm117, %v104, %v82
      %v121 = vsub.s32 %v101, %v100
      %v122 = vshra.s32 %v121, 1
      %v123 = vadd.s32 %v100, %v122
      %vm124 = vcmp.le.s32.totalorder %v25, %v123
      %v125 = vsel %vm124, 1.0, 0.0
      %126 = vadd.xlane.f32.xlu0 %v125
      %v127 = vpop.xlane.xlu0 %126
      %v128 = vrot.slane %v127, 4
      %v129 = vadd.f32 %v127, %v128
      %v130 = vrot.slane %v129, 2
      %v131 = vadd.f32 %v129, %v130
      %v132 = vrot.slane %v131, 1
      %v133 = vadd.f32 %v131, %v132
      %s134 = vtos %v133
      %v135 = vstv %s134
      %vm136 = vcmp.ge.f32.partialorder %v135, %v29
      %v137 = vadd.s32 %v123, 1
      %v138 = vsel %vm136, %v100, %v137
      %v139 = vsel %vm136, %v123, %v101
      %v140 = vsub.s32 %v120, %v119
      %v141 = vshra.s32 %v140, 1
      %v142 = vadd.s32 %v119, %v141
      %vm143 = vcmp.le.s32.totalorder %v25, %v142
      %v144 = vsel %vm143, 1.0, 0.0
      %145 = vadd.xlane.f32.xlu0 %v144
      %v146 = vpop.xlane.xlu0 %145
      %v147 = vrot.slane %v146, 4
      %v148 = vadd.f32 %v146, %v147
      %v149 = vrot.slane %v148, 2
      %v150 = vadd.f32 %v148, %v149
      %v151 = vrot.slane %v150, 1
      %v152 = vadd.f32 %v150, %v151
      %s153 = vtos %v152
      %v154 = vstv %s153
      %vm155 = vcmp.ge.f32.partialorder %v154, %v34
      %v156 = vadd.s32 %v142, 1
      %v157 = vsel %vm155, %v119, %v156
      %v158 = vsel %vm155, %v142, %v120
      %v159 = vsub.s32 %v139, %v138
      %v160 = vshra.s32 %v159, 1
      %v161 = vadd.s32 %v138, %v160
      %vm162 = vcmp.le.s32.totalorder %v25, %v161
      %v163 = vsel %vm162, 1.0, 0.0
      %164 = vadd.xlane.f32.xlu0 %v163
      %v165 = vpop.xlane.xlu0 %164
      %v166 = vrot.slane %v165, 4
      %v167 = vadd.f32 %v165, %v166
      %v168 = vrot.slane %v167, 2
      %v169 = vadd.f32 %v167, %v168
      %v170 = vrot.slane %v169, 1
      %v171 = vadd.f32 %v169, %v170
      %s172 = vtos %v171
      %v173 = vstv %s172
      %vm174 = vcmp.ge.f32.partialorder %v173, %v29
      %v175 = vadd.s32 %v161, 1
      %v176 = vsel %vm174, %v138, %v175
      %v177 = vsel %vm174, %v161, %v139
      %v178 = vsub.s32 %v158, %v157
      %v179 = vshra.s32 %v178, 1
      %v180 = vadd.s32 %v157, %v179
      %vm181 = vcmp.le.s32.totalorder %v25, %v180
      %v182 = vsel %vm181, 1.0, 0.0
      %183 = vadd.xlane.f32.xlu0 %v182
      %v184 = vpop.xlane.xlu0 %183
      %v185 = vrot.slane %v184, 4
      %v186 = vadd.f32 %v184, %v185
      %v187 = vrot.slane %v186, 2
      %v188 = vadd.f32 %v186, %v187
      %v189 = vrot.slane %v188, 1
      %v190 = vadd.f32 %v188, %v189
      %s191 = vtos %v190
      %v192 = vstv %s191
      %vm193 = vcmp.ge.f32.partialorder %v192, %v34
      %v194 = vadd.s32 %v180, 1
      %v195 = vsel %vm193, %v157, %v194
      %v196 = vsel %vm193, %v180, %v158
    $region18: #{loe_loss.1} parent=1 // loop_footer
      %s40 = sadd.s32 1, %s36
    $region19: #{loe_loss.1} parent=1 // loop_footer_branch
      %35 = sbr.rel target = $region15
    $region20: #{loe_loss.1} parent=1 // loop_exit
      _
    %vm199 = vcmp.lt.s32.totalorder %v25, %v41
    %v200 = vsel %vm199, 1.0, 0.0
    %201 = vadd.xlane.f32.xlu0 %v200
    %v202 = vpop.xlane.xlu0 %201
    %v203 = vrot.slane %v202, 4
    %v204 = vadd.f32 %v202, %v203
    %v205 = vrot.slane %v204, 2
    %v206 = vadd.f32 %v204, %v205
    %v207 = vrot.slane %v206, 1
    %v208 = vadd.f32 %v206, %v207
    %s209 = vtos %v208
    %v210 = vstv %s209
    %v211 = vsel %vm199, %v25, 0.0
    %212 = vadd.xlane.f32.xlu0 %v211
    %v213 = vpop.xlane.xlu0 %212
    %v214 = vrot.slane %v213, 4
    %v215 = vadd.f32 %v213, %v214
    %v216 = vrot.slane %v215, 2
    %v217 = vadd.f32 %v215, %v216
    %v218 = vrot.slane %v217, 1
    %v219 = vadd.f32 %v217, %v218
    %s220 = vtos %v219
    %v221 = vstv %s220
    %v222 = vsub.f32 %v29, %v210
    %v223 = vmul.f32 %v222, %v41
    %v224 = vadd.f32 %v221, %v223
    %vm225 = vcmp.gt.f32.partialorder %v29, 0.0
    %v226 = vsel %vm225, %v224, 0.0
    %v227 = vadd.f32 %v29, 0.0
    %vm229 = vcmp.gt.s32.totalorder %v25, %v43
    %vm230 = vcmp.lt.s32.totalorder %v25, 2147483647
    %vm231 = vmand %vm229, %vm230
    %v232 = vsel %vm231, 1.0, 0.0
    %233 = vadd.xlane.f32.xlu0 %v232
    %v234 = vpop.xlane.xlu0 %233
    %v235 = vrot.slane %v234, 4
    %v236 = vadd.f32 %v234, %v235
    %v237 = vrot.slane %v236, 2
    %v238 = vadd.f32 %v236, %v237
    %v239 = vrot.slane %v238, 1
    %v240 = vadd.f32 %v238, %v239
    %s241 = vtos %v240
    %v242 = vstv %s241
    %v243 = vadd.f32 %v25, 1e-06
    %v244 = vrcp.pop %v243
    %v245 = vmul.f32 1.0, %v244
    %v246 = vsel %vm231, %v245, 0.0
    %247 = vadd.xlane.f32.xlu0 %v246
    %v248 = vpop.xlane.xlu0 %247
    %v249 = vrot.slane %v248, 4
    %v250 = vadd.f32 %v248, %v249
    %v251 = vrot.slane %v250, 2
    %v252 = vadd.f32 %v250, %v251
    %v253 = vrot.slane %v252, 1
    %v254 = vadd.f32 %v252, %v253
    %s255 = vtos %v254
    %v256 = vstv %s255
    %v257 = vsub.f32 %v31, %v242
    %v258 = vadd.f32 %v43, 1e-06
    %v259 = vrcp.pop %v258
    %v260 = vmul.f32 1.0, %v259
    %v261 = vmul.f32 %v257, %v260
    %v262 = vadd.f32 %v256, %v261
    %vm263 = vcmp.gt.f32.partialorder %v31, 0.0
    %v264 = vsel %vm263, %v262, 0.0
    %v265 = vadd.f32 %v227, %v31
    %v266 = vadd.f32 %v226, %v264
    %v267 = vrcp.pop %v265
    %v268 = vmul.f32 %v266, %v267
    %vm269 = vcmask 0
    %270 = vst.msk [vmem:[#allocation5] sm:$0x1] %vm269, %v268
    // Predicated region
    $region21: #{loe_loss.1} parent=1 // pred_check
      _
    $region22: #{loe_loss.1} parent=1 // pred_check_branch
      %272 = sbr.rel (0) target = $region24
    $region23: #{loe_loss.1} parent=1 // pred_region
      %s274 = ssub.s32 16, 16
      %275 = vsyncadd [#allocation3], %s274
      %s277 = sshll.u32 [#allocation5], 4
      %s278 = int_to_ptr.vmem [resolvable:$true] %s277
      %280 = dma.vmem_to_hbm [thread:$0]  %s278, 16, %s2, [#allocation3]
    $region24: #{loe_loss.1} parent=1 // pred_fallthru
      _
    // Predicated region
    $region25: #{loe_loss.1} parent=1 // pred_check
      _
    $region26: #{loe_loss.1} parent=1 // pred_check_branch
      %282 = sbr.rel (0) target = $region28
    $region27: #{loe_loss.1} parent=1 // pred_region
      %283 = dma.done [#allocation3], 16
    $region28: #{loe_loss.1} parent=1 // pred_fallthru
      _
    %284 = vsyncpa [#allocation3], 1
    %285 = vsyncpa [#allocation4], 1

</llo_original>
